<compile_context>
chip_gen: v7x
topology: tpu7x:2x2x1
jax: 0.10.0
libtpu: 0.0.40
codegen_flags: <defaults>
</compile_context>

<pallas_src>
import jax
import jax.numpy as jnp
from jax.experimental import pallas as pl
from jax.experimental.pallas import tpu as pltpu


def _round_up(x, m):
    return ((x + m - 1) // m) * m


# ---------------------------------------------------------------------------
# Pallas kernel: out = relu(x @ W1 + b1) @ W2 + b2
#   x  : (tile_m, in_dim_pad)  bf16
#   W1 : (in_dim_pad, hidden)  bf16      W2 : (hidden, out_pad) bf16
#   b1 : (1, hidden)           f32       b2 : (1, out_pad)      f32
#   out: (tile_m, out_pad)     f32
# ---------------------------------------------------------------------------
def _xpath_ffnn_kernel(x_ref, w1_ref, b1_ref, w2_ref, b2_ref, o_ref):
    h = jnp.dot(x_ref[...], w1_ref[...], preferred_element_type=jnp.float32)
    h = jnp.maximum(h + b1_ref[...], 0.0)                       # f32 bias + ReLU
    y = jnp.dot(h.astype(w2_ref.dtype), w2_ref[...],
                preferred_element_type=jnp.float32)
    o_ref[...] = (y + b2_ref[...]).astype(o_ref.dtype)


def _bspec(shape, index_map, bufs=None):
    """BlockSpec with optional explicit buffer depth; falls back to default pipelining."""
    if bufs is not None and hasattr(pl, "Buffered"):
        try:
            return pl.BlockSpec(shape, index_map, pipeline_mode=pl.Buffered(bufs))
        except TypeError:           # older BlockSpec signature without pipeline_mode
            pass
    return pl.BlockSpec(shape, index_map)


def _default_tile_m():
    # v5e is MXU-compute-bound -> bigger M tiles amortise per-grid-step overhead.
    try:
        kind = jax.devices()[0].device_kind.lower()
    except Exception:
        return 256
    return 512 if ("v5e" in kind or "v5 lite" in kind or "v5lite" in kind) else 256


def _choose_row_tile(T, tile_m):
    """Pick the M tile (multiple of 16 for bf16 sublane packing) and padded row count."""
    tm = min(tile_m, _round_up(max(T, 1), 16))
    # v7x megacore: guarantee >= 2 grid steps when there is enough work for both TCs.
    if 16 < T <= 2 * tm:
        tm = min(tm, max(16, _round_up((T + 1) // 2, 16)))
    tm = max(16, _round_up(tm, 16))
    T_pad = _round_up(max(T, 1), tm)
    return tm, T_pad


def _ffnn_pallas(x, w1, b1, w2, b2, *, tm):
    """x: (T_pad, in_dim_pad) bf16; weights pre-cast/padded. Returns (T_pad, out_pad) f32."""
    T_pad, in_dim = x.shape
    hidden = w1.shape[1]
    out_pad = w2.shape[1]
    num_steps = T_pad // tm
    x_bufs = 3 if num_steps >= 3 else None      # deepen x pipeline only when it can help

    # VMEM budget: Buffered(3) x tile + single-buffered weights + double-buffered out.
    vmem_bytes = ((3 if x_bufs else 2) * tm * in_dim * 2   # x tile, bf16
                  + in_dim * hidden * 2                    # W1 bf16 (single buffer)
                  + hidden * out_pad * 2                    # W2 bf16 (single buffer)
                  + (hidden + out_pad) * 4                  # biases f32
                  + 2 * tm * out_pad * 4)                   # out tile, f32
    vmem_limit = min(max(int(vmem_bytes * 1.5), 32 * 1024 * 1024), 48 * 1024 * 1024)

    def build(buffered):
        wb = 1 if buffered else None
        in_specs = [
            _bspec((tm, in_dim), lambda i: (i, 0), x_bufs if buffered else None),
            _bspec((in_dim, hidden), lambda i: (0, 0), wb),   # resident weights:
            _bspec((1, hidden), lambda i: (0, 0), wb),        # constant index_map
            _bspec((hidden, out_pad), lambda i: (0, 0), wb),  # -> DMA'd once
            _bspec((1, out_pad), lambda i: (0, 0), wb),
        ]
        return pl.pallas_call(
            _xpath_ffnn_kernel,
            out_shape=jax.ShapeDtypeStruct((T_pad, out_pad), jnp.float32),
            grid_spec=pltpu.PrefetchScalarGridSpec(
                num_scalar_prefetch=0,
                grid=(num_steps,),
                in_specs=in_specs,
                out_specs=pl.BlockSpec((tm, out_pad), lambda i: (i, 0)),
            ),
            compiler_params=pltpu.CompilerParams(
                dimension_semantics=("parallel",),   # shards grid across TCs on v7x
                vmem_limit_bytes=vmem_limit,
            ),
        )

    try:
        return build(True)(x, w1, b1, w2, b2)
    except Exception:
        # Fallback: default double-buffering if explicit Buffered pipelining is rejected.
        return build(False)(x, w1, b1, w2, b2)


# ---------------------------------------------------------------------------
# Parameters (one-time kernel-side prep is hoisted here, not done per forward)
# ---------------------------------------------------------------------------
class XPathFFNNParams:
    """Deterministic in-script parameter init mirroring the torch module."""

    def __init__(self, key, vocab_size, node_embedding_dim=64,
                 index_embedding_dim=64, max_xpath_length=50,
                 hidden_dim=512, out_dim=64, max_index_value=101):
        assert node_embedding_dim == index_embedding_dim  # aggregation 'add'
        k = jax.random.split(key, 6)
        self.node_embedding_dim = node_embedding_dim
        self.max_xpath_length = max_xpath_length
        self.in_dim = node_embedding_dim * max_xpath_length
        self.hidden_dim = hidden_dim
        self.out_dim = out_dim

        self.tag_table = jax.random.normal(k[0], (vocab_size, node_embedding_dim),
                                           jnp.float32) * 0.02
        self.idx_table = jax.random.normal(k[1], (max_index_value, index_embedding_dim),
                                           jnp.float32) * 0.02
        # Linear weights stored already transposed: (in, out); y = x @ W + b
        self.w1 = jax.random.normal(k[2], (self.in_dim, hidden_dim), jnp.float32) * 0.02
        self.b1 = jax.random.normal(k[3], (hidden_dim,), jnp.float32) * 0.02
        self.w2 = jax.random.normal(k[4], (hidden_dim, out_dim), jnp.float32) * 0.02
        self.b2 = jax.random.normal(k[5], (out_dim,), jnp.float32) * 0.02

        # ---- one-time prep for the Pallas hot path (hoisted out of the forward) ----
        self.in_dim_pad = _round_up(self.in_dim, 128)        # lane-dense first-matmul operand
        self.out_pad = _round_up(max(out_dim, 128), 128)     # lane-dense output slab

        self.tag_table_bf16 = self.tag_table.astype(jnp.bfloat16)
        self.idx_table_bf16 = self.idx_table.astype(jnp.bfloat16)

        w1p = self.w1.astype(jnp.bfloat16)
        if self.in_dim_pad != self.in_dim:
            w1p = jnp.pad(w1p, ((0, self.in_dim_pad - self.in_dim), (0, 0)))
        self.w1_bf16 = w1p

        w2p = self.w2.astype(jnp.bfloat16)
        b2p = self.b2
        if self.out_pad != out_dim:
            w2p = jnp.pad(w2p, ((0, 0), (0, self.out_pad - out_dim)))
            b2p = jnp.pad(b2p, ((0, self.out_pad - out_dim),))
        self.w2_bf16 = w2p

        self.b1_2d = self.b1.reshape(1, hidden_dim).astype(jnp.float32)
        self.b2_2d = b2p.reshape(1, self.out_pad).astype(jnp.float32)

        jax.block_until_ready((self.w1_bf16, self.w2_bf16,
                               self.tag_table_bf16, self.idx_table_bf16))


def _gather_and_flatten_bf16(params, xpath_tag_ids, xpath_index, t_pad=None):
    """bf16 embedding lookups + 'add' aggregation + flatten/pad to the kernel input dim.

    Row padding (to t_pad) is applied to the int32 id tensors BEFORE the gather, so the
    only (rows, in_dim) bf16 activation materialised is the one the kernel streams.
    """
    B, N, L = xpath_tag_ids.shape
    T = B * N
    D = params.node_embedding_dim
    tag_ids = xpath_tag_ids.reshape(T, L)
    idx_ids = xpath_index.reshape(T, L)
    if t_pad is not None and t_pad > T:
        pad = ((0, t_pad - T), (0, 0))
        tag_ids = jnp.pad(tag_ids, pad)     # cheap int32 pad, not a bf16 activation copy
        idx_ids = jnp.pad(idx_ids, pad)
    x = (jnp.take(params.tag_table_bf16, tag_ids, axis=0)
         + jnp.take(params.idx_table_bf16, idx_ids, axis=0)).reshape(tag_ids.shape[0], L * D)
    # torch semantics: pad/truncate the xpath-length axis to linear_layer_input_dim,
    # then pad further to the lane-dense in_dim_pad used by the kernel (zeros x zero W1
    # rows contribute exactly 0).
    x = x[:, : min(L * D, params.in_dim)]
    if x.shape[1] < params.in_dim_pad:
        x = jnp.pad(x, ((0, 0), (0, params.in_dim_pad - x.shape[1])))
    return x, B, N, T


def xpath_ffnn_forward(params, xpath_tag_ids, xpath_index, *, tile_m=None):
    """
    xpath_tag_ids : (batch, max_num_nodes, L) int32
    xpath_index   : (batch, max_num_nodes, L) int32
    returns       : (batch, max_num_nodes, out_dim) f32
    """
    if tile_m is None:
        tile_m = _default_tile_m()
    B, N, _ = xpath_tag_ids.shape
    T = B * N
    tm, T_pad = _choose_row_tile(T, tile_m)
    x, _, _, _ = _gather_and_flatten_bf16(params, xpath_tag_ids, xpath_index, t_pad=T_pad)
    out = _ffnn_pallas(x, params.w1_bf16, params.b1_2d,
                       params.w2_bf16, params.b2_2d, tm=tm)
    return out[:T, :params.out_dim].reshape(B, N, params.out_dim)


def xpath_ffnn_reference(params, xpath_tag_ids, xpath_index):
    """Pure-JAX reference matching the kernel's numerics (bf16 matmuls, f32 accum)."""
    x, B, N, T = _gather_and_flatten_bf16(params, xpath_tag_ids, xpath_index, t_pad=None)
    h = jnp.dot(x, params.w1_bf16, preferred_element_type=jnp.float32) + params.b1_2d
    h = jnp.maximum(h, 0.0)
    y = jnp.dot(h.astype(jnp.bfloat16), params.w2_bf16,
                preferred_element_type=jnp.float32) + params.b2_2d
    return y[:, :params.out_dim].reshape(B, N, params.out_dim)


if __name__ == "__main__":
    key = jax.random.PRNGKey(0)
    k_param, k_tag, k_idx = jax.random.split(key, 3)

    # small, module-consistent shapes
    batch, max_num_nodes, max_xpath_length = 2, 4, 8
    vocab_size = 20
    node_dim = index_dim = 16
    hidden_dim = 64
    out_dim = 32
    max_index_value = 101

    params = XPathFFNNParams(
        k_param, vocab_size,
        node_embedding_dim=node_dim, index_embedding_dim=index_dim,
        max_xpath_length=max_xpath_length, hidden_dim=hidden_dim,
        out_dim=out_dim, max_index_value=max_index_value)

    xpath_tag_ids = jax.random.randint(
        k_tag, (batch, max_num_nodes, max_xpath_length), 0, vocab_size, jnp.int32)
    xpath_index = jax.random.randint(
        k_idx, (batch, max_num_nodes, max_xpath_length), 0, max_index_value, jnp.int32)

    out = xpath_ffnn_forward(params, xpath_tag_ids, xpath_index)
    out = jax.block_until_ready(out)

    ref = xpath_ffnn_reference(params, xpath_tag_ids, xpath_index)
    assert out.shape == (batch, max_num_nodes, out_dim), out.shape
    assert jnp.allclose(out, ref, atol=2e-4, rtol=2e-3), float(jnp.max(jnp.abs(out - ref)))

    print("KERNEL_OK")
</pallas_src>

<mosaic_0001>
module attributes {stable_mosaic.version = 11 : i64} {
  func.func @_xpath_ffnn_kernel(%arg0: i32, %arg1: memref<16x128xbf16, #tpu.memory_space<vmem>>, %arg2: memref<128x64xbf16, #tpu.memory_space<vmem>>, %arg3: memref<1x64xf32, #tpu.memory_space<vmem>>, %arg4: memref<64x128xbf16, #tpu.memory_space<vmem>>, %arg5: memref<1x128xf32, #tpu.memory_space<vmem>>, %arg6: memref<16x128xf32, #tpu.memory_space<vmem>>) attributes {dimension_semantics = [#tpu.dimension_semantics<parallel>], iteration_bounds = array<i64: 1>, scalar_prefetch = 0 : i64, scratch_operands = 0 : i64, tpu.core_type = #tpu.core_type<tc>, window_params = [{transform_indices = @transform_0, window_bounds = array<i64: 16, 128>}, {pipeline_mode = #tpu.pipeline_mode<synchronous>, transform_indices = @transform_1, window_bounds = array<i64: 128, 64>}, {pipeline_mode = #tpu.pipeline_mode<synchronous>, transform_indices = @transform_2, window_bounds = array<i64: 1, 64>}, {pipeline_mode = #tpu.pipeline_mode<synchronous>, transform_indices = @transform_3, window_bounds = array<i64: 64, 128>}, {pipeline_mode = #tpu.pipeline_mode<synchronous>, transform_indices = @transform_4, window_bounds = array<i64: 1, 128>}, {transform_indices = @transform_5, window_bounds = array<i64: 16, 128>}]} {
    %c0 = arith.constant 0 : index
    %c0_0 = arith.constant 0 : index
    %0 = vector.load %arg1[%c0, %c0_0] : memref<16x128xbf16, #tpu.memory_space<vmem>>, vector<16x128xbf16>
    %c0_1 = arith.constant 0 : index
    %c0_2 = arith.constant 0 : index
    %1 = vector.load %arg2[%c0_1, %c0_2] : memref<128x64xbf16, #tpu.memory_space<vmem>>, vector<128x64xbf16>
    %cst = arith.constant dense<0.000000e+00> : vector<16x64xf32>
    %2 = tpu.matmul %0, %1, %cst {dimension_numbers = #tpu.dot_dimension_numbers<[1], [0], [0], [1], [0, 0, 1, 1], [], []>} : vector<16x128xbf16>, vector<128x64xbf16>, vector<16x64xf32> -> vector<16x64xf32>
    %c0_3 = arith.constant 0 : index
    %c0_4 = arith.constant 0 : index
    %3 = vector.load %arg3[%c0_3, %c0_4] : memref<1x64xf32, #tpu.memory_space<vmem>>, vector<1x64xf32>
    %4 = vector.broadcast %3 : vector<1x64xf32> to vector<16x64xf32>
    %5 = arith.addf %2, %4 : vector<16x64xf32>
    %cst_5 = arith.constant 0.000000e+00 : f32
    %6 = vector.broadcast %cst_5 : f32 to vector<16x64xf32>
    %7 = arith.maximumf %5, %6 : vector<16x64xf32>
    %8 = arith.truncf %7 : vector<16x64xf32> to vector<16x64xbf16>
    %c0_6 = arith.constant 0 : index
    %c0_7 = arith.constant 0 : index
    %9 = vector.load %arg4[%c0_6, %c0_7] : memref<64x128xbf16, #tpu.memory_space<vmem>>, vector<64x128xbf16>
    %cst_8 = arith.constant dense<0.000000e+00> : vector<16x128xf32>
    %10 = tpu.matmul %8, %9, %cst_8 {dimension_numbers = #tpu.dot_dimension_numbers<[1], [0], [0], [1], [0, 0, 1, 1], [], []>} : vector<16x64xbf16>, vector<64x128xbf16>, vector<16x128xf32> -> vector<16x128xf32>
    %c0_9 = arith.constant 0 : index
    %c0_10 = arith.constant 0 : index
    %11 = vector.load %arg5[%c0_9, %c0_10] : memref<1x128xf32, #tpu.memory_space<vmem>>, vector<1x128xf32>
    %12 = vector.broadcast %11 : vector<1x128xf32> to vector<16x128xf32>
    %13 = arith.addf %10, %12 : vector<16x128xf32>
    %c0_11 = arith.constant 0 : index
    %c0_12 = arith.constant 0 : index
    %14 = vector.load %arg6[%c0_11, %c0_12] : memref<16x128xf32, #tpu.memory_space<vmem>>, vector<16x128xf32>
    tpu.vector_store %arg6[%c0_11, %c0_12], %13 {strides = array<i32>} : memref<16x128xf32, #tpu.memory_space<vmem>>, vector<16x128xf32>,
    return
  }
  func.func @transform_0(%arg0: i32) -> (i32, i32) {
    %c0_i32 = arith.constant 0 : i32
    %c0_i32_0 = arith.constant 0 : i32
    return %arg0, %c0_i32 : i32, i32
  }
  func.func @transform_1(%arg0: i32) -> (i32, i32) {
    %c0_i32 = arith.constant 0 : i32
    %c0_i32_0 = arith.constant 0 : i32
    %c0_i32_1 = arith.constant 0 : i32
    return %c0_i32, %c0_i32_0 : i32, i32
  }
  func.func @transform_2(%arg0: i32) -> (i32, i32) {
    %c0_i32 = arith.constant 0 : i32
    %c0_i32_0 = arith.constant 0 : i32
    %c0_i32_1 = arith.constant 0 : i32
    return %c0_i32, %c0_i32_0 : i32, i32
  }
  func.func @transform_3(%arg0: i32) -> (i32, i32) {
    %c0_i32 = arith.constant 0 : i32
    %c0_i32_0 = arith.constant 0 : i32
    %c0_i32_1 = arith.constant 0 : i32
    return %c0_i32, %c0_i32_0 : i32, i32
  }
  func.func @transform_4(%arg0: i32) -> (i32, i32) {
    %c0_i32 = arith.constant 0 : i32
    %c0_i32_0 = arith.constant 0 : i32
    %c0_i32_1 = arith.constant 0 : i32
    return %c0_i32, %c0_i32_0 : i32, i32
  }
  func.func @transform_5(%arg0: i32) -> (i32, i32) {
    %c0_i32 = arith.constant 0 : i32
    %c0_i32_0 = arith.constant 0 : i32
    return %arg0, %c0_i32 : i32, i32
  }
}

module attributes {stable_mosaic.version = 11 : i64} {
  func.func @_xpath_ffnn_kernel(%arg0: i32, %arg1: memref<16x128xbf16, #tpu.memory_space<vmem>>, %arg2: memref<128x64xbf16, #tpu.memory_space<vmem>>, %arg3: memref<1x64xf32, #tpu.memory_space<vmem>>, %arg4: memref<64x128xbf16, #tpu.memory_space<vmem>>, %arg5: memref<1x128xf32, #tpu.memory_space<vmem>>, %arg6: memref<16x128xf32, #tpu.memory_space<vmem>>) attributes {dimension_semantics = [#tpu.dimension_semantics<parallel>], iteration_bounds = array<i64: 1>, scalar_prefetch = 0 : i64, scratch_operands = 0 : i64, tpu.core_type = #tpu.core_type<tc>, window_params = [{transform_indices = @transform_0, window_bounds = array<i64: 16, 128>}, {pipeline_mode = #tpu.pipeline_mode<synchronous>, transform_indices = @transform_1, window_bounds = array<i64: 128, 64>}, {pipeline_mode = #tpu.pipeline_mode<synchronous>, transform_indices = @transform_2, window_bounds = array<i64: 1, 64>}, {pipeline_mode = #tpu.pipeline_mode<synchronous>, transform_indices = @transform_3, window_bounds = array<i64: 64, 128>}, {pipeline_mode = #tpu.pipeline_mode<synchronous>, transform_indices = @transform_4, window_bounds = array<i64: 1, 128>}, {transform_indices = @transform_5, window_bounds = array<i64: 16, 128>}]} {
    %c0 = arith.constant 0 : index
    %c0_0 = arith.constant 0 : index
    %0 = vector.load %arg1[%c0, %c0_0] : memref<16x128xbf16, #tpu.memory_space<vmem>>, vector<16x128xbf16>
    %c0_1 = arith.constant 0 : index
    %c0_2 = arith.constant 0 : index
    %1 = vector.load %arg2[%c0_1, %c0_2] : memref<128x64xbf16, #tpu.memory_space<vmem>>, vector<128x64xbf16>
    %cst = arith.constant dense<0.000000e+00> : vector<16x64xf32>
    %2 = tpu.matmul %0, %1, %cst {dimension_numbers = #tpu.dot_dimension_numbers<[1], [0], [0], [1], [0, 0, 1, 1], [], []>} : vector<16x128xbf16>, vector<128x64xbf16>, vector<16x64xf32> -> vector<16x64xf32>
    %c0_3 = arith.constant 0 : index
    %c0_4 = arith.constant 0 : index
    %3 = vector.load %arg3[%c0_3, %c0_4] : memref<1x64xf32, #tpu.memory_space<vmem>>, vector<1x64xf32>
    %4 = vector.broadcast %3 : vector<1x64xf32> to vector<16x64xf32>
    %5 = arith.addf %2, %4 : vector<16x64xf32>
    %cst_5 = arith.constant 0.000000e+00 : f32
    %6 = vector.broadcast %cst_5 : f32 to vector<16x64xf32>
    %7 = arith.maximumf %5, %6 : vector<16x64xf32>
    %8 = arith.truncf %7 : vector<16x64xf32> to vector<16x64xbf16>
    %c0_6 = arith.constant 0 : index
    %c0_7 = arith.constant 0 : index
    %9 = vector.load %arg4[%c0_6, %c0_7] : memref<64x128xbf16, #tpu.memory_space<vmem>>, vector<64x128xbf16>
    %cst_8 = arith.constant dense<0.000000e+00> : vector<16x128xf32>
    %10 = tpu.matmul %8, %9, %cst_8 {dimension_numbers = #tpu.dot_dimension_numbers<[1], [0], [0], [1], [0, 0, 1, 1], [], []>} : vector<16x64xbf16>, vector<64x128xbf16>, vector<16x128xf32> -> vector<16x128xf32>
    %c0_9 = arith.constant 0 : index
    %c0_10 = arith.constant 0 : index
    %11 = vector.load %arg5[%c0_9, %c0_10] : memref<1x128xf32, #tpu.memory_space<vmem>>, vector<1x128xf32>
    %12 = vector.broadcast %11 : vector<1x128xf32> to vector<16x128xf32>
    %13 = arith.addf %10, %12 : vector<16x128xf32>
    %c0_11 = arith.constant 0 : index
    %c0_12 = arith.constant 0 : index
    %14 = vector.load %arg6[%c0_11, %c0_12] : memref<16x128xf32, #tpu.memory_space<vmem>>, vector<16x128xf32>
    tpu.vector_store %arg6[%c0_11, %c0_12], %13 {strides = array<i32>} : memref<16x128xf32, #tpu.memory_space<vmem>>, vector<16x128xf32>,
    return
  }
  func.func @transform_0(%arg0: i32) -> (i32, i32) {
    %c0_i32 = arith.constant 0 : i32
    %c0_i32_0 = arith.constant 0 : i32
    return %arg0, %c0_i32 : i32, i32
  }
  func.func @transform_1(%arg0: i32) -> (i32, i32) {
    %c0_i32 = arith.constant 0 : i32
    %c0_i32_0 = arith.constant 0 : i32
    %c0_i32_1 = arith.constant 0 : i32
    return %c0_i32, %c0_i32_0 : i32, i32
  }
  func.func @transform_2(%arg0: i32) -> (i32, i32) {
    %c0_i32 = arith.constant 0 : i32
    %c0_i32_0 = arith.constant 0 : i32
    %c0_i32_1 = arith.constant 0 : i32
    return %c0_i32, %c0_i32_0 : i32, i32
  }
  func.func @transform_3(%arg0: i32) -> (i32, i32) {
    %c0_i32 = arith.constant 0 : i32
    %c0_i32_0 = arith.constant 0 : i32
    %c0_i32_1 = arith.constant 0 : i32
    return %c0_i32, %c0_i32_0 : i32, i32
  }
  func.func @transform_4(%arg0: i32) -> (i32, i32) {
    %c0_i32 = arith.constant 0 : i32
    %c0_i32_0 = arith.constant 0 : i32
    %c0_i32_1 = arith.constant 0 : i32
    return %c0_i32, %c0_i32_0 : i32, i32
  }
  func.func @transform_5(%arg0: i32) -> (i32, i32) {
    %c0_i32 = arith.constant 0 : i32
    %c0_i32_0 = arith.constant 0 : i32
    return %arg0, %c0_i32 : i32, i32
  }
}

</mosaic_0001>

<llo_original>
// kernel: tpu_custom_call.1
$region0: #{tpu_custom_call.1}
  #allocation0 [shape = 'u32[]', space=smem, size = 0x4, offset = 0x4, fixed_abs, tag = 'smem constant byte address 0x4 - core index']
  #allocation1 [shape = 'u32[144,128]{1,0:T(1,128)}', space=vmem, size = 0x12000, scoped, tag = 'internal scratch']
  %s0 = inlined_call_operand.vmem [shape: bf16[16,128], index: 0, kind: input, shape index: {}]
  %s1 = inlined_call_operand.vmem [shape: bf16[128,64], index: 1, kind: input, shape index: {}]
  %s2 = inlined_call_operand.vmem [shape: f32[1,64], index: 2, kind: input, shape index: {}]
  %s3 = inlined_call_operand.vmem [shape: bf16[64,128], index: 3, kind: input, shape index: {}]
  %s4 = inlined_call_operand.vmem [shape: f32[1,128], index: 4, kind: input, shape index: {}]
  %s5 = inlined_call_operand.hbm [shape: f32[16,128], index: 5, kind: output, shape index: {}]
  %s6 = sld [smem:[#allocation0]]
  $region30: #{tpu_custom_call.1} parent=0
    _
  %s8 = ssub.s32 1, %s6
  %s9 = scalar_select 0, %s8, %s6
  $region1: #{tpu_custom_call.1} parent=0
    #allocation2 [shape = 'u8[8192]{0}', space=vmem, size = 0x2000, scoped, tag = 'output window, operand 0, single buffered']
    #allocation3 [shape = 's32[1]{0}', space=sflag, size = 0x4, scoped, tag = 'scoped memory for tpu_custom_call.1']
    %10 = vsyncpa [#allocation3], 0
    // Predicated region
    $region2: #{tpu_custom_call.1} parent=1 // pred_check
      _
    $region3: #{tpu_custom_call.1} parent=1 // pred_check_branch
      %12 = sbr.rel (0) target = $region5
    $region4: #{tpu_custom_call.1} parent=1 // pred_region
      _
    $region5: #{tpu_custom_call.1} parent=1 // pred_fallthru
      _
    // Predicated region
    $region6: #{tpu_custom_call.1} parent=1 // pred_check
      _
    $region7: #{tpu_custom_call.1} parent=1 // pred_check_branch
      %14 = sbr.rel (0) target = $region9
    $region8: #{tpu_custom_call.1} parent=1 // pred_region
      _
    $region9: #{tpu_custom_call.1} parent=1 // pred_fallthru
      _
    // Predicated region
    $region10: #{tpu_custom_call.1} parent=1 // pred_check
      _
    $region11: #{tpu_custom_call.1} parent=1 // pred_check_branch
      %16 = sbr.rel (0) target = $region13
    $region12: #{tpu_custom_call.1} parent=1 // pred_region
      _
    $region13: #{tpu_custom_call.1} parent=1 // pred_fallthru
      _
    // Predicated region
    $region14: #{tpu_custom_call.1} parent=1 // pred_check
      _
    $region15: #{tpu_custom_call.1} parent=1 // pred_check_branch
      %18 = sbr.rel (0) target = $region17
    $region16: #{tpu_custom_call.1} parent=1 // pred_region
      _
    $region17: #{tpu_custom_call.1} parent=1 // pred_fallthru
      _
    // Predicated region
    $region18: #{tpu_custom_call.1} parent=1 // pred_check
      _
    $region19: #{tpu_custom_call.1} parent=1 // pred_check_branch
      %20 = sbr.rel (0) target = $region21
    $region20: #{tpu_custom_call.1} parent=1 // pred_region
      _
    $region21: #{tpu_custom_call.1} parent=1 // pred_fallthru
      _
    %v22 = vld [vmem:[%s0] sm:$0xf]
    %v23 = vld [vmem:[%s0 + $0x4] sm:$0xf]
    %v24 = vld [vmem:[%s1] sm:$0xf]
    %v25 = vld [vmem:[%s1 + $0x4] sm:$0xf]
    %v26 = vld [vmem:[%s1 + $0x8] sm:$0xf]
    %v27 = vld [vmem:[%s1 + $0xc] sm:$0xf]
    %v28 = vld [vmem:[%s1 + $0x10] sm:$0xf]
    %v29 = vld [vmem:[%s1 + $0x14] sm:$0xf]
    %v30 = vld [vmem:[%s1 + $0x18] sm:$0xf]
    %v31 = vld [vmem:[%s1 + $0x1c] sm:$0xf]
    %v32 = vld [vmem:[%s1 + $0x20] sm:$0xf]
    %v33 = vld [vmem:[%s1 + $0x24] sm:$0xf]
    %v34 = vld [vmem:[%s1 + $0x28] sm:$0xf]
    %v35 = vld [vmem:[%s1 + $0x2c] sm:$0xf]
    %v36 = vld [vmem:[%s1 + $0x30] sm:$0xf]
    %v37 = vld [vmem:[%s1 + $0x34] sm:$0xf]
    %v38 = vld [vmem:[%s1 + $0x38] sm:$0xf]
    %v39 = vld [vmem:[%s1 + $0x3c] sm:$0xf]
    %v40 = vld [vmem:[%s2] sm:$0x1]
    %v42 = vlaneseq
    %v43 = vshrl.u32 %v42, 7
    %v44 = vsub.s32 0, %v43
    %v45 = vrot.slane %v40, %v44
    %v49 = vunpack.c.l.b16 %v22
    %v50 = vunpack.c.l.b16 %v23
    %v51 = vpack.c.b16 %v50, %v49
    %v69 = vunpack.c.l.b16 %v24
    %v70 = vunpack.c.l.b16 %v25
    %v71 = vunpack.c.l.b16 %v26
    %v72 = vunpack.c.l.b16 %v27
    %v73 = vunpack.c.l.b16 %v28
    %v74 = vunpack.c.l.b16 %v29
    %v75 = vunpack.c.l.b16 %v30
    %v76 = vunpack.c.l.b16 %v31
    %v77 = vunpack.c.l.b16 %v32
    %v78 = vunpack.c.l.b16 %v33
    %v79 = vunpack.c.l.b16 %v34
    %v80 = vunpack.c.l.b16 %v35
    %v81 = vunpack.c.l.b16 %v36
    %v82 = vunpack.c.l.b16 %v37
    %v83 = vunpack.c.l.b16 %v38
    %v84 = vunpack.c.l.b16 %v39
    %v85 = vpack.c.b16 %v70, %v69
    %v86 = vpack.c.b16 %v72, %v71
    %v87 = vpack.c.b16 %v74, %v73
    %v88 = vpack.c.b16 %v76, %v75
    %v89 = vpack.c.b16 %v78, %v77
    %v90 = vpack.c.b16 %v80, %v79
    %v91 = vpack.c.b16 %v82, %v81
    %v92 = vpack.c.b16 %v84, %v83
    %101 = vmatprep.subr.bf16.mxu0 0
    %102 = vmatpush1.bf16.msra.mxu0 %v85
    %103 = vmatprep.subr.bf16.mxu0 0
    %104 = vmatpush1.bf16.msra.mxu0 %v86
    %105 = vmatprep.subr.bf16.mxu0 0
    %106 = vmatpush1.bf16.msra.mxu0 %v87
    %107 = vmatprep.subr.bf16.mxu0 0
    %108 = vmatpush1.bf16.msra.mxu0 %v88
    %109 = vmatprep.subr.bf16.mxu0 0
    %110 = vmatpush1.bf16.msra.mxu0 %v89
    %111 = vmatprep.subr.bf16.mxu0 0
    %112 = vmatpush1.bf16.msra.mxu0 %v90
    %113 = vmatprep.subr.bf16.mxu0 0
    %114 = vmatpush1.bf16.msra.mxu0 %v91
    %115 = vmatprep.subr.bf16.mxu0 0
    %116 = vmatpush1.bf16.msra.mxu0 %v92
    %117 = vmatprep.subr.bf16.mxu0 0
    %118 = vmatpush1.bf16.msra.mxu0 0
    %119 = vmatprep.subr.bf16.mxu0 0
    %120 = vmatpush1.bf16.msra.mxu0 0
    %121 = vmatprep.subr.bf16.mxu0 0
    %122 = vmatpush1.bf16.msra.mxu0 0
    %123 = vmatprep.subr.bf16.mxu0 0
    %124 = vmatpush1.bf16.msra.mxu0 0
    %125 = vmatprep.subr.bf16.mxu0 0
    %126 = vmatpush1.bf16.msra.mxu0 0
    %127 = vmatprep.subr.bf16.mxu0 0
    %128 = vmatpush1.bf16.msra.mxu0 0
    %129 = vmatprep.subr.bf16.mxu0 0
    %130 = vmatpush1.bf16.msra.mxu0 0
    %131 = vmatprep.subr.bf16.mxu0 0
    %132 = vmatpush1.bf16.msra.mxu0 0
    %133 = vmatprep.mubr.bf16.mxu0 0
    %134 = vmatmul.mubr.bf16.gmra.mrb[0].mxu0 %v51
    %v135 = vpop.f32.mrb[0].mxu0
    %v136 = vadd.f32 %v45, %v135
    %v137 = vpop.f32.mrb[0].mxu0
    %v138 = vpop.f32.mrb[0].mxu0
    %v139 = vadd.f32 %v45, %v138
    %v140 = vpop.f32.mrb[0].mxu0
    %141 = vdwg.mxu0
    %v142 = vmax.f32 %v136, 0.0
    %v143 = vmax.f32 %v139, 0.0
    %v144 = vpack.c.bf16 %v143, %v142
    %v145 = vld [vmem:[%s3] sm:$0xf]
    %v146 = vld [vmem:[%s3 + $0x4] sm:$0xf]
    %v147 = vld [vmem:[%s3 + $0x8] sm:$0xf]
    %v148 = vld [vmem:[%s3 + $0xc] sm:$0xf]
    %v149 = vld [vmem:[%s3 + $0x10] sm:$0xf]
    %v150 = vld [vmem:[%s3 + $0x14] sm:$0xf]
    %v151 = vld [vmem:[%s3 + $0x18] sm:$0xf]
    %v152 = vld [vmem:[%s3 + $0x1c] sm:$0xf]
    %v153 = vld [vmem:[%s4] sm:$0x1]
    %v155 = vlaneseq
    %v156 = vshrl.u32 %v155, 7
    %v157 = vsub.s32 0, %v156
    %v158 = vrot.slane %v153, %v157
    %v168 = vunpack.c.l.b16 %v145
    %v169 = vunpack.c.l.b16 %v146
    %v170 = vunpack.c.l.b16 %v147
    %v171 = vunpack.c.l.b16 %v148
    %v172 = vunpack.c.l.b16 %v149
    %v173 = vunpack.c.l.b16 %v150
    %v174 = vunpack.c.l.b16 %v151
    %v175 = vunpack.c.l.b16 %v152
    %v176 = vpack.c.b16 %v169, %v168
    %v177 = vpack.c.b16 %v171, %v170
    %v178 = vpack.c.b16 %v173, %v172
    %v179 = vpack.c.b16 %v175, %v174
    %vm184 = vcmask 523264
    %v186 = vsel %vm184, %v144, 0
    %188 = vmatprep.subr.bf16.mxu0 0
    %189 = vmatpush1.bf16.msra.mxu0 %v176
    %190 = vmatprep.subr.bf16.mxu0 0
    %191 = vmatpush1.bf16.msra.mxu0 %v177
    %192 = vmatprep.subr.bf16.mxu0 0
    %193 = vmatpush1.bf16.msra.mxu0 %v178
    %194 = vmatprep.subr.bf16.mxu0 0
    %195 = vmatpush1.bf16.msra.mxu0 %v179
    %196 = vmatprep.subr.bf16.mxu0 0
    %197 = vmatpush1.bf16.msra.mxu0 0
    %198 = vmatprep.subr.bf16.mxu0 0
    %199 = vmatpush1.bf16.msra.mxu0 0
    %200 = vmatprep.subr.bf16.mxu0 0
    %201 = vmatpush1.bf16.msra.mxu0 0
    %202 = vmatprep.subr.bf16.mxu0 0
    %203 = vmatpush1.bf16.msra.mxu0 0
    %204 = vmatprep.subr.bf16.mxu0 0
    %205 = vmatpush1.bf16.msra.mxu0 0
    %206 = vmatprep.subr.bf16.mxu0 0
    %207 = vmatpush1.bf16.msra.mxu0 0
    %208 = vmatprep.subr.bf16.mxu0 0
    %209 = vmatpush1.bf16.msra.mxu0 0
    %210 = vmatprep.subr.bf16.mxu0 0
    %211 = vmatpush1.bf16.msra.mxu0 0
    %212 = vmatprep.subr.bf16.mxu0 0
    %213 = vmatpush1.bf16.msra.mxu0 0
    %214 = vmatprep.subr.bf16.mxu0 0
    %215 = vmatpush1.bf16.msra.mxu0 0
    %216 = vmatprep.subr.bf16.mxu0 0
    %217 = vmatpush1.bf16.msra.mxu0 0
    %218 = vmatprep.subr.bf16.mxu0 0
    %219 = vmatpush1.bf16.msra.mxu0 0
    %220 = vmatprep.mubr.bf16.mxu0 0
    %221 = vmatmul.mubr.bf16.gmra.mrb[0].mxu0 %v186
    %v222 = vpop.f32.mrb[0].mxu0
    %v223 = vadd.f32 %v158, %v222
    %v224 = vpop.f32.mrb[0].mxu0
    %v225 = vpop.f32.mrb[0].mxu0
    %v226 = vadd.f32 %v158, %v225
    %v227 = vpop.f32.mrb[0].mxu0
    %228 = vdwg.mxu0
    %229 = vst [vmem:[#allocation2] sm:$0xff] %v223
    %230 = vst [vmem:[#allocation2 + $0x8] sm:$0xff] %v226
    // Predicated region
    $region22: #{tpu_custom_call.1} parent=1 // pred_check
      _
    $region23: #{tpu_custom_call.1} parent=1 // pred_check_branch
      %232 = sbr.rel (0) target = $region25
    $region24: #{tpu_custom_call.1} parent=1 // pred_region
      %s234 = ssub.s32 256, 256
      %235 = vsyncadd [#allocation3], %s234
      %s236 = sshll.u32 [#allocation2], 4
      %s237 = int_to_ptr.vmem [resolvable:$true] %s236
      %242 = dma.vmem_to_hbm [thread:$0]  %s237, 256, %s5, [#allocation3], 128, 128, 8
    $region25: #{tpu_custom_call.1} parent=1 // pred_fallthru
      _
    // Predicated region
    $region26: #{tpu_custom_call.1} parent=1 // pred_check
      _
    $region27: #{tpu_custom_call.1} parent=1 // pred_check_branch
      %244 = sbr.rel (0) target = $region29
    $region28: #{tpu_custom_call.1} parent=1 // pred_region
      %245 = dma.done [#allocation3], 256
    $region29: #{tpu_custom_call.1} parent=1 // pred_fallthru
      _
    %246 = vsyncpa [#allocation3], 1

// kernel: tpu_custom_call.1
$region0: #{tpu_custom_call.1}
  #allocation0 [shape = 'u32[]', space=smem, size = 0x4, offset = 0x4, fixed_abs, tag = 'smem constant byte address 0x4 - core index']
  #allocation1 [shape = 'u32[144,128]{1,0:T(1,128)}', space=vmem, size = 0x12000, scoped, tag = 'internal scratch']
  %s0 = inlined_call_operand.vmem [shape: bf16[16,128], index: 0, kind: input, shape index: {}]
  %s1 = inlined_call_operand.vmem [shape: bf16[128,64], index: 1, kind: input, shape index: {}]
  %s2 = inlined_call_operand.vmem [shape: f32[1,64], index: 2, kind: input, shape index: {}]
  %s3 = inlined_call_operand.vmem [shape: bf16[64,128], index: 3, kind: input, shape index: {}]
  %s4 = inlined_call_operand.vmem [shape: f32[1,128], index: 4, kind: input, shape index: {}]
  %s5 = inlined_call_operand.hbm [shape: f32[16,128], index: 5, kind: output, shape index: {}]
  %s6 = sld [smem:[#allocation0]]
  $region30: #{tpu_custom_call.1} parent=0
    _
  %s8 = ssub.s32 1, %s6
  %s9 = scalar_select 0, %s8, %s6
  $region1: #{tpu_custom_call.1} parent=0
    #allocation2 [shape = 'u8[8192]{0}', space=vmem, size = 0x2000, scoped, tag = 'output window, operand 0, single buffered']
    #allocation3 [shape = 's32[1]{0}', space=sflag, size = 0x4, scoped, tag = 'scoped memory for tpu_custom_call.1']
    %10 = vsyncpa [#allocation3], 0
    // Predicated region
    $region2: #{tpu_custom_call.1} parent=1 // pred_check
      _
    $region3: #{tpu_custom_call.1} parent=1 // pred_check_branch
      %12 = sbr.rel (0) target = $region5
    $region4: #{tpu_custom_call.1} parent=1 // pred_region
      _
    $region5: #{tpu_custom_call.1} parent=1 // pred_fallthru
      _
    // Predicated region
    $region6: #{tpu_custom_call.1} parent=1 // pred_check
      _
    $region7: #{tpu_custom_call.1} parent=1 // pred_check_branch
      %14 = sbr.rel (0) target = $region9
    $region8: #{tpu_custom_call.1} parent=1 // pred_region
      _
    $region9: #{tpu_custom_call.1} parent=1 // pred_fallthru
      _
    // Predicated region
    $region10: #{tpu_custom_call.1} parent=1 // pred_check
      _
    $region11: #{tpu_custom_call.1} parent=1 // pred_check_branch
      %16 = sbr.rel (0) target = $region13
    $region12: #{tpu_custom_call.1} parent=1 // pred_region
      _
    $region13: #{tpu_custom_call.1} parent=1 // pred_fallthru
      _
    // Predicated region
    $region14: #{tpu_custom_call.1} parent=1 // pred_check
      _
    $region15: #{tpu_custom_call.1} parent=1 // pred_check_branch
      %18 = sbr.rel (0) target = $region17
    $region16: #{tpu_custom_call.1} parent=1 // pred_region
      _
    $region17: #{tpu_custom_call.1} parent=1 // pred_fallthru
      _
    // Predicated region
    $region18: #{tpu_custom_call.1} parent=1 // pred_check
      _
    $region19: #{tpu_custom_call.1} parent=1 // pred_check_branch
      %20 = sbr.rel (0) target = $region21
    $region20: #{tpu_custom_call.1} parent=1 // pred_region
      _
    $region21: #{tpu_custom_call.1} parent=1 // pred_fallthru
      _
    %v22 = vld [vmem:[%s0] sm:$0xf]
    %v23 = vld [vmem:[%s0 + $0x4] sm:$0xf]
    %v24 = vld [vmem:[%s1] sm:$0xf]
    %v25 = vld [vmem:[%s1 + $0x4] sm:$0xf]
    %v26 = vld [vmem:[%s1 + $0x8] sm:$0xf]
    %v27 = vld [vmem:[%s1 + $0xc] sm:$0xf]
    %v28 = vld [vmem:[%s1 + $0x10] sm:$0xf]
    %v29 = vld [vmem:[%s1 + $0x14] sm:$0xf]
    %v30 = vld [vmem:[%s1 + $0x18] sm:$0xf]
    %v31 = vld [vmem:[%s1 + $0x1c] sm:$0xf]
    %v32 = vld [vmem:[%s1 + $0x20] sm:$0xf]
    %v33 = vld [vmem:[%s1 + $0x24] sm:$0xf]
    %v34 = vld [vmem:[%s1 + $0x28] sm:$0xf]
    %v35 = vld [vmem:[%s1 + $0x2c] sm:$0xf]
    %v36 = vld [vmem:[%s1 + $0x30] sm:$0xf]
    %v37 = vld [vmem:[%s1 + $0x34] sm:$0xf]
    %v38 = vld [vmem:[%s1 + $0x38] sm:$0xf]
    %v39 = vld [vmem:[%s1 + $0x3c] sm:$0xf]
    %v40 = vld [vmem:[%s2] sm:$0x1]
    %v42 = vlaneseq
    %v43 = vshrl.u32 %v42, 7
    %v44 = vsub.s32 0, %v43
    %v45 = vrot.slane %v40, %v44
    %v49 = vunpack.c.l.b16 %v22
    %v50 = vunpack.c.l.b16 %v23
    %v51 = vpack.c.b16 %v50, %v49
    %v69 = vunpack.c.l.b16 %v24
    %v70 = vunpack.c.l.b16 %v25
    %v71 = vunpack.c.l.b16 %v26
    %v72 = vunpack.c.l.b16 %v27
    %v73 = vunpack.c.l.b16 %v28
    %v74 = vunpack.c.l.b16 %v29
    %v75 = vunpack.c.l.b16 %v30
    %v76 = vunpack.c.l.b16 %v31
    %v77 = vunpack.c.l.b16 %v32
    %v78 = vunpack.c.l.b16 %v33
    %v79 = vunpack.c.l.b16 %v34
    %v80 = vunpack.c.l.b16 %v35
    %v81 = vunpack.c.l.b16 %v36
    %v82 = vunpack.c.l.b16 %v37
    %v83 = vunpack.c.l.b16 %v38
    %v84 = vunpack.c.l.b16 %v39
    %v85 = vpack.c.b16 %v70, %v69
    %v86 = vpack.c.b16 %v72, %v71
    %v87 = vpack.c.b16 %v74, %v73
    %v88 = vpack.c.b16 %v76, %v75
    %v89 = vpack.c.b16 %v78, %v77
    %v90 = vpack.c.b16 %v80, %v79
    %v91 = vpack.c.b16 %v82, %v81
    %v92 = vpack.c.b16 %v84, %v83
    %101 = vmatprep.subr.bf16.mxu0 0
    %102 = vmatpush1.bf16.msra.mxu0 %v85
    %103 = vmatprep.subr.bf16.mxu0 0
    %104 = vmatpush1.bf16.msra.mxu0 %v86
    %105 = vmatprep.subr.bf16.mxu0 0
    %106 = vmatpush1.bf16.msra.mxu0 %v87
    %107 = vmatprep.subr.bf16.mxu0 0
    %108 = vmatpush1.bf16.msra.mxu0 %v88
    %109 = vmatprep.subr.bf16.mxu0 0
    %110 = vmatpush1.bf16.msra.mxu0 %v89
    %111 = vmatprep.subr.bf16.mxu0 0
    %112 = vmatpush1.bf16.msra.mxu0 %v90
    %113 = vmatprep.subr.bf16.mxu0 0
    %114 = vmatpush1.bf16.msra.mxu0 %v91
    %115 = vmatprep.subr.bf16.mxu0 0
    %116 = vmatpush1.bf16.msra.mxu0 %v92
    %117 = vmatprep.subr.bf16.mxu0 0
    %118 = vmatpush1.bf16.msra.mxu0 0
    %119 = vmatprep.subr.bf16.mxu0 0
    %120 = vmatpush1.bf16.msra.mxu0 0
    %121 = vmatprep.subr.bf16.mxu0 0
    %122 = vmatpush1.bf16.msra.mxu0 0
    %123 = vmatprep.subr.bf16.mxu0 0
    %124 = vmatpush1.bf16.msra.mxu0 0
    %125 = vmatprep.subr.bf16.mxu0 0
    %126 = vmatpush1.bf16.msra.mxu0 0
    %127 = vmatprep.subr.bf16.mxu0 0
    %128 = vmatpush1.bf16.msra.mxu0 0
    %129 = vmatprep.subr.bf16.mxu0 0
    %130 = vmatpush1.bf16.msra.mxu0 0
    %131 = vmatprep.subr.bf16.mxu0 0
    %132 = vmatpush1.bf16.msra.mxu0 0
    %133 = vmatprep.mubr.bf16.mxu0 0
    %134 = vmatmul.mubr.bf16.gmra.mrb[0].mxu0 %v51
    %v135 = vpop.f32.mrb[0].mxu0
    %v136 = vadd.f32 %v45, %v135
    %v137 = vpop.f32.mrb[0].mxu0
    %v138 = vpop.f32.mrb[0].mxu0
    %v139 = vadd.f32 %v45, %v138
    %v140 = vpop.f32.mrb[0].mxu0
    %141 = vdwg.mxu0
    %v142 = vmax.f32 %v136, 0.0
    %v143 = vmax.f32 %v139, 0.0
    %v144 = vpack.c.bf16 %v143, %v142
    %v145 = vld [vmem:[%s3] sm:$0xf]
    %v146 = vld [vmem:[%s3 + $0x4] sm:$0xf]
    %v147 = vld [vmem:[%s3 + $0x8] sm:$0xf]
    %v148 = vld [vmem:[%s3 + $0xc] sm:$0xf]
    %v149 = vld [vmem:[%s3 + $0x10] sm:$0xf]
    %v150 = vld [vmem:[%s3 + $0x14] sm:$0xf]
    %v151 = vld [vmem:[%s3 + $0x18] sm:$0xf]
    %v152 = vld [vmem:[%s3 + $0x1c] sm:$0xf]
    %v153 = vld [vmem:[%s4] sm:$0x1]
    %v155 = vlaneseq
    %v156 = vshrl.u32 %v155, 7
    %v157 = vsub.s32 0, %v156
    %v158 = vrot.slane %v153, %v157
    %v168 = vunpack.c.l.b16 %v145
    %v169 = vunpack.c.l.b16 %v146
    %v170 = vunpack.c.l.b16 %v147
    %v171 = vunpack.c.l.b16 %v148
    %v172 = vunpack.c.l.b16 %v149
    %v173 = vunpack.c.l.b16 %v150
    %v174 = vunpack.c.l.b16 %v151
    %v175 = vunpack.c.l.b16 %v152
    %v176 = vpack.c.b16 %v169, %v168
    %v177 = vpack.c.b16 %v171, %v170
    %v178 = vpack.c.b16 %v173, %v172
    %v179 = vpack.c.b16 %v175, %v174
    %vm184 = vcmask 523264
    %v186 = vsel %vm184, %v144, 0
    %188 = vmatprep.subr.bf16.mxu0 0
    %189 = vmatpush1.bf16.msra.mxu0 %v176
    %190 = vmatprep.subr.bf16.mxu0 0
    %191 = vmatpush1.bf16.msra.mxu0 %v177
    %192 = vmatprep.subr.bf16.mxu0 0
    %193 = vmatpush1.bf16.msra.mxu0 %v178
    %194 = vmatprep.subr.bf16.mxu0 0
    %195 = vmatpush1.bf16.msra.mxu0 %v179
    %196 = vmatprep.subr.bf16.mxu0 0
    %197 = vmatpush1.bf16.msra.mxu0 0
    %198 = vmatprep.subr.bf16.mxu0 0
    %199 = vmatpush1.bf16.msra.mxu0 0
    %200 = vmatprep.subr.bf16.mxu0 0
    %201 = vmatpush1.bf16.msra.mxu0 0
    %202 = vmatprep.subr.bf16.mxu0 0
    %203 = vmatpush1.bf16.msra.mxu0 0
    %204 = vmatprep.subr.bf16.mxu0 0
    %205 = vmatpush1.bf16.msra.mxu0 0
    %206 = vmatprep.subr.bf16.mxu0 0
    %207 = vmatpush1.bf16.msra.mxu0 0
    %208 = vmatprep.subr.bf16.mxu0 0
    %209 = vmatpush1.bf16.msra.mxu0 0
    %210 = vmatprep.subr.bf16.mxu0 0
    %211 = vmatpush1.bf16.msra.mxu0 0
    %212 = vmatprep.subr.bf16.mxu0 0
    %213 = vmatpush1.bf16.msra.mxu0 0
    %214 = vmatprep.subr.bf16.mxu0 0
    %215 = vmatpush1.bf16.msra.mxu0 0
    %216 = vmatprep.subr.bf16.mxu0 0
    %217 = vmatpush1.bf16.msra.mxu0 0
    %218 = vmatprep.subr.bf16.mxu0 0
    %219 = vmatpush1.bf16.msra.mxu0 0
    %220 = vmatprep.mubr.bf16.mxu0 0
    %221 = vmatmul.mubr.bf16.gmra.mrb[0].mxu0 %v186
    %v222 = vpop.f32.mrb[0].mxu0
    %v223 = vadd.f32 %v158, %v222
    %v224 = vpop.f32.mrb[0].mxu0
    %v225 = vpop.f32.mrb[0].mxu0
    %v226 = vadd.f32 %v158, %v225
    %v227 = vpop.f32.mrb[0].mxu0
    %228 = vdwg.mxu0
    %229 = vst [vmem:[#allocation2] sm:$0xff] %v223
    %230 = vst [vmem:[#allocation2 + $0x8] sm:$0xff] %v226
    // Predicated region
    $region22: #{tpu_custom_call.1} parent=1 // pred_check
      _
    $region23: #{tpu_custom_call.1} parent=1 // pred_check_branch
      %232 = sbr.rel (0) target = $region25
    $region24: #{tpu_custom_call.1} parent=1 // pred_region
      %s234 = ssub.s32 256, 256
      %235 = vsyncadd [#allocation3], %s234
      %s236 = sshll.u32 [#allocation2], 4
      %s237 = int_to_ptr.vmem [resolvable:$true] %s236
      %242 = dma.vmem_to_hbm [thread:$0]  %s237, 256, %s5, [#allocation3], 128, 128, 8
    $region25: #{tpu_custom_call.1} parent=1 // pred_fallthru
      _
    // Predicated region
    $region26: #{tpu_custom_call.1} parent=1 // pred_check
      _
    $region27: #{tpu_custom_call.1} parent=1 // pred_check_branch
      %244 = sbr.rel (0) target = $region29
    $region28: #{tpu_custom_call.1} parent=1 // pred_region
      %245 = dma.done [#allocation3], 256
    $region29: #{tpu_custom_call.1} parent=1 // pred_fallthru
      _
    %246 = vsyncpa [#allocation3], 1

</llo_original>
